<compile_context>
chip_gen: v5e
topology: v5e:2x2
jax: 0.10.0
libtpu: 0.0.40
codegen_flags: <defaults>
</compile_context>

<pallas_src>
import functools

import jax
import jax.numpy as jnp
import numpy as np
from jax import lax
from jax.experimental import pallas as pl
from jax.experimental.pallas import tpu as pltpu


def _rup(x: int, m: int) -> int:
    return ((x + m - 1) // m) * m


# ----------------------------- kernel body ----------------------------------
def _finer_kernel(x_ref, w_ref, b_ref, o_ref, *, omega_0: float, row_chunk: int):
    """One (tm, tn) output tile: o = sin(omega_0 * (|y| + 1) * y), y = x@W + b.

    The row tile is processed in `row_chunk`-row sub-chunks so the MXU work of
    chunk k+1 is independent of chunk k's sin epilogue and the scheduler can
    overlap them (grid steps only pipeline DMA, not compute).
    """
    tm = x_ref.shape[0]
    n_chunks = tm // row_chunk
    b = b_ref[...]                                   # (1, tn), hoisted out of the loop

    def body(k, carry):
        r0 = pl.multiple_of(k * row_chunk, row_chunk)
        xs = x_ref[pl.ds(r0, row_chunk), :]
        y = jnp.dot(xs, w_ref[...], preferred_element_type=jnp.float32) + b
        # Exactly the module's expression order: sin(omega_0 * (|y| + 1) * y).
        o_ref[pl.ds(r0, row_chunk), :] = jnp.sin(
            omega_0 * (jnp.abs(y) + 1.0) * y).astype(o_ref.dtype)
        return carry

    lax.fori_loop(0, n_chunks, body, 0, unroll=True)


# ----------------------------- VMEM budget -----------------------------------
def _vmem_budget_bytes() -> int:
    """Generation-aware VMEM budget (v5e/v6e: 128 MiB, v7x: 64 MiB physical)."""
    try:
        cap = int(pltpu.get_tpu_info().vmem_capacity_bytes)
        return max(16 << 20, min(cap // 2, 48 << 20))
    except Exception:
        return 24 << 20          # conservative fallback, fits every generation


# ----------------------------- wrappers --------------------------------------
def prepare_finer_params(weight, bias):
    """Pre-transpose + lane-pad W/b once (hoisted out of the per-call path).

    weight: (out_channels, in_channels)  -- PyTorch nn.Linear convention
    bias:   (out_channels,)
    Returns (w_t_padded (in, out_pad), bias_padded (1, out_pad), out_channels).
    """
    out_c, in_c = weight.shape
    out_c_pad = _rup(out_c, 128)                     # lane-dense, unmasked stores
    w_t = jnp.asarray(weight, jnp.float32).T         # (in, out)
    b = jnp.asarray(bias, jnp.float32)
    if out_c_pad != out_c:
        w_t = jnp.pad(w_t, ((0, 0), (0, out_c_pad - out_c)))
        b = jnp.pad(b, (0, out_c_pad - out_c))
    return w_t, b.reshape(1, out_c_pad), out_c


def finer_layer_prepared(x, w_t, b2d, out_c, *, omega_0: float = 30.0,
                         tile_m: int = 512):
    """FINERLayer forward with pre-prepared (transposed/padded) parameters."""
    *lead, in_c = x.shape
    out_c_pad = w_t.shape[1]
    x2d = jnp.asarray(x, jnp.float32).reshape(-1, in_c)
    n = x2d.shape[0]

    budget = _vmem_budget_bytes()
    in_c_lane = _rup(in_c, 128)     # x tile lane padding (layout)
    in_c_sub = _rup(in_c, 8)        # W tile sublane padding (layout)

    # ---- N tile: largest multiple of 128 dividing out_c_pad whose W tile ----
    # fits in <= budget/4.  Bounds VMEM independent of layer width (v7x-safe).
    w_tile_cap = budget // 4
    tn = 128
    for cand in range(out_c_pad, 127, -128):
        if out_c_pad % cand == 0 and in_c_sub * cand * 4 <= w_tile_cap:
            tn = cand
            break
    grid_n = out_c_pad // tn

    # Grid-invariant W/bias (grid_n == 1) only need a single VMEM buffer.
    w_bufs = 1 if grid_n == 1 else 2
    w_pipe = pl.Buffered(1) if grid_n == 1 else None

    # ---- M tile: as big as the budget allows, including the f32 matmul ------
    # result and sin temporaries the previous sizer ignored.
    fixed = w_bufs * in_c_sub * tn * 4 + w_bufs * 8 * tn * 4       # W + bias
    scratch = 4 * min(tile_m, 256) * tn * 4                        # dot/sin temps
    per_row = 2 * in_c_lane * 4 + 2 * tn * 4                       # x + out (dbl-buf)
    tm_cap = max(8, (budget - fixed - scratch) // per_row)

    tm = min(tile_m, tm_cap)
    if tm >= 256:                   # keep full MXU passes / unmasked stores
        tm = (tm // 256) * 256
    elif tm >= 128:
        tm = 128
    else:
        tm = max(8, (tm // 8) * 8)
    tm = min(tm, _rup(n, 8))
    tm = max(8, (tm // 8) * 8)

    # v7x has 2 TensorCores: avoid a single row block when it could be split.
    if n >= 512 and -(-n // tm) == 1:
        tm = _rup(-(-n // 2), 256)

    grid_m = -(-n // tm)
    n_pad = grid_m * tm
    if n_pad != n:
        # TODO(synk): handle the ragged last row block in-kernel (masked store)
        # instead of this wrapper-side pad, which re-writes x through HBM.
        x2d = jnp.pad(x2d, ((0, n_pad - n), (0, 0)))

    row_chunk = 256 if (tm % 256 == 0 and tm > 256) else tm

    cost = pl.CostEstimate(
        flops=2 * n_pad * in_c * out_c_pad,
        transcendentals=n_pad * out_c_pad,
        bytes_accessed=4 * (grid_n * n_pad * in_c + in_c * out_c_pad
                            + out_c_pad + n_pad * out_c_pad),
    )

    kernel = functools.partial(_finer_kernel, omega_0=float(omega_0),
                               row_chunk=row_chunk)

    if w_pipe is not None:
        w_spec = pl.BlockSpec((in_c, tn), lambda j, i: (0, j), pipeline_mode=w_pipe)
        b_spec = pl.BlockSpec((1, tn), lambda j, i: (0, j), pipeline_mode=w_pipe)
    else:
        w_spec = pl.BlockSpec((in_c, tn), lambda j, i: (0, j))
        b_spec = pl.BlockSpec((1, tn), lambda j, i: (0, j))

    out = pl.pallas_call(
        kernel,
        out_shape=jax.ShapeDtypeStruct((n_pad, out_c_pad), x.dtype),
        grid_spec=pltpu.PrefetchScalarGridSpec(
            num_scalar_prefetch=0,
            # N outer (each W tile read from HBM once), M inner (rows stream).
            grid=(grid_n, grid_m),
            in_specs=[
                pl.BlockSpec((tm, in_c), lambda j, i: (i, 0)),    # x rows
                w_spec,                                           # W tile
                b_spec,                                           # bias tile
            ],
            out_specs=pl.BlockSpec((tm, tn), lambda j, i: (i, j)),
        ),
        compiler_params=pltpu.CompilerParams(
            dimension_semantics=("arbitrary", "parallel"),
            vmem_limit_bytes=int(min(budget + (8 << 20), 128 << 20)),
        ),
        cost_estimate=cost,
    )(x2d, w_t, b2d)

    out = out[:n, :out_c]
    return out.reshape(*lead, out_c)


def finer_layer(x, weight, bias, *, omega_0: float = 30.0, tile_m: int = 512):
    """Convenience wrapper taking PyTorch-convention (out, in) weight."""
    w_t, b2d, out_c = prepare_finer_params(weight, bias)
    return finer_layer_prepared(x, w_t, b2d, out_c, omega_0=omega_0, tile_m=tile_m)


# ----------------------------- init + reference ------------------------------
def init_finer_params(key, in_channels, out_channels, *, is_first=False,
                      omega_0=30.0, first_bias_scale=None):
    """Deterministic parameter init matching FINERLayer.__init__ semantics."""
    k_w, k_b = jax.random.split(key)
    if is_first:
        w_bound = 1.0 / in_channels
    else:
        w_bound = np.sqrt(6.0 / in_channels) / omega_0
    weight = jax.random.uniform(
        k_w, (out_channels, in_channels), jnp.float32, -w_bound, w_bound)
    b_bound = 1.0 / np.sqrt(in_channels)
    if is_first and first_bias_scale is not None:
        b_bound = first_bias_scale
    bias = jax.random.uniform(
        k_b, (out_channels,), jnp.float32, -b_bound, b_bound)
    return weight, bias


def _check_against_f64(out, x, weight, bias, omega_0):
    """Compare against a float64 ground truth with a phase-derived tolerance.

    sin() of a phase of magnitude P computed in float32 can only be accurate
    to ~P * eps_f32 (the phase itself is rounded), so the tolerance scales
    with the largest phase magnitude instead of being a fixed 1e-4.
    """
    x64 = np.asarray(x, np.float64).reshape(-1, x.shape[-1])
    w64 = np.asarray(weight, np.float64)
    b64 = np.asarray(bias, np.float64)
    y = x64 @ w64.T + b64
    phase = omega_0 * (np.abs(y) + 1.0) * y
    ref = np.sin(phase).reshape(out.shape)
    atol = 5e-4 + 32.0 * float(np.finfo(np.float32).eps) * float(np.abs(phase).max())
    np.testing.assert_allclose(np.asarray(out, np.float64), ref, rtol=0.0, atol=atol)


if __name__ == "__main__":
    key = jax.random.PRNGKey(0)
    k_x, k_p, k_x2, k_p2 = jax.random.split(key, 4)
    omega_0 = 30.0

    # --- small demo shape; out_c < 128 exercises the output-padding path -----
    batch, seq, in_channels, out_channels = 2, 8, 32, 64
    x = jax.random.normal(k_x, (batch, seq, in_channels), jnp.float32)
    weight, bias = init_finer_params(
        k_p, in_channels, out_channels,
        is_first=True, omega_0=omega_0, first_bias_scale=20.0)

    out = finer_layer(x, weight, bias, omega_0=omega_0)
    out = jax.block_until_ready(out)
    _check_against_f64(out, x, weight, bias, omega_0)

    # --- non-divisible row count + big tile + prepared-params path -----------
    n_pts, in_c2, out_c2 = 1000, 3, 256
    x2 = jax.random.normal(k_x2, (n_pts, in_c2), jnp.float32)
    w2, b2 = init_finer_params(
        k_p2, in_c2, out_c2, is_first=False, omega_0=omega_0)

    w2_t, b2_2d, out_c2_real = prepare_finer_params(w2, b2)   # hoisted once
    out2 = finer_layer_prepared(x2, w2_t, b2_2d, out_c2_real,
                                omega_0=omega_0, tile_m=512)
    out2 = jax.block_until_ready(out2)
    _check_against_f64(out2, x2, w2, b2, omega_0)

    print("KERNEL_OK")
</pallas_src>

<mosaic_0001>
module attributes {stable_mosaic.version = 11 : i64} {
  func.func @_finer_kernel(%arg0: i32, %arg1: i32, %arg2: memref<16x32xf32, #tpu.memory_space<vmem>>, %arg3: memref<32x128xf32, #tpu.memory_space<vmem>>, %arg4: memref<1x128xf32, #tpu.memory_space<vmem>>, %arg5: memref<16x128xf32, #tpu.memory_space<vmem>>) attributes {dimension_semantics = [#tpu.dimension_semantics<arbitrary>, #tpu.dimension_semantics<parallel>], iteration_bounds = array<i64: 1, 1>, scalar_prefetch = 0 : i64, scratch_operands = 0 : i64, tpu.core_type = #tpu.core_type<tc>, window_params = [{transform_indices = @transform_0, window_bounds = array<i64: 16, 32>}, {pipeline_mode = #tpu.pipeline_mode<synchronous>, transform_indices = @transform_1, window_bounds = array<i64: 32, 128>}, {pipeline_mode = #tpu.pipeline_mode<synchronous>, transform_indices = @transform_2, window_bounds = array<i64: 1, 128>}, {transform_indices = @transform_3, window_bounds = array<i64: 16, 128>}]} {
    %c0 = arith.constant 0 : index
    %c0_0 = arith.constant 0 : index
    %0 = vector.load %arg4[%c0, %c0_0] : memref<1x128xf32, #tpu.memory_space<vmem>>, vector<1x128xf32>
    %c0_i32 = arith.constant 0 : i32
    %c16_i32 = arith.constant 16 : i32
    %1 = arith.muli %c0_i32, %c16_i32 : i32
    %2 = tpu.assume_multiple %1, 16 : i32
    %3 = arith.index_cast %2 : i32 to index
    %c0_1 = arith.constant 0 : index
    %4 = vector.load %arg2[%3, %c0_1] : memref<16x32xf32, #tpu.memory_space<vmem>>, vector<16x32xf32>
    %c0_2 = arith.constant 0 : index
    %c0_3 = arith.constant 0 : index
    %5 = vector.load %arg3[%c0_2, %c0_3] : memref<32x128xf32, #tpu.memory_space<vmem>>, vector<32x128xf32>
    %cst = arith.constant dense<0.000000e+00> : vector<16x128xf32>
    %6 = tpu.matmul %4, %5, %cst {dimension_numbers = #tpu.dot_dimension_numbers<[1], [0], [0], [1], [0, 0, 1, 1], [], []>} : vector<16x32xf32>, vector<32x128xf32>, vector<16x128xf32> -> vector<16x128xf32>
    %7 = vector.broadcast %0 : vector<1x128xf32> to vector<16x128xf32>
    %8 = arith.addf %6, %7 : vector<16x128xf32>
    %9 = math.absf %8 : vector<16x128xf32>
    %cst_4 = arith.constant 1.000000e+00 : f32
    %10 = vector.broadcast %cst_4 : f32 to vector<16x128xf32>
    %11 = arith.addf %9, %10 : vector<16x128xf32>
    %cst_5 = arith.constant 3.000000e+01 : f32
    %12 = vector.broadcast %cst_5 : f32 to vector<16x128xf32>
    %13 = arith.mulf %12, %11 : vector<16x128xf32>
    %14 = arith.mulf %13, %8 : vector<16x128xf32>
    %15 = math.sin %14 : vector<16x128xf32>
    %16 = arith.index_cast %2 : i32 to index
    %c0_6 = arith.constant 0 : index
    %17 = vector.load %arg5[%16, %c0_6] : memref<16x128xf32, #tpu.memory_space<vmem>>, vector<16x128xf32>
    tpu.vector_store %arg5[%16, %c0_6], %15 {strides = array<i32>} : memref<16x128xf32, #tpu.memory_space<vmem>>, vector<16x128xf32>,
    %c1_i32 = arith.constant 1 : i32
    return
  }
  func.func @transform_0(%arg0: i32, %arg1: i32) -> (i32, i32) {
    %c0_i32 = arith.constant 0 : i32
    %c0_i32_0 = arith.constant 0 : i32
    return %arg1, %c0_i32 : i32, i32
  }
  func.func @transform_1(%arg0: i32, %arg1: i32) -> (i32, i32) {
    %c0_i32 = arith.constant 0 : i32
    %c0_i32_0 = arith.constant 0 : i32
    return %c0_i32, %arg0 : i32, i32
  }
  func.func @transform_2(%arg0: i32, %arg1: i32) -> (i32, i32) {
    %c0_i32 = arith.constant 0 : i32
    %c0_i32_0 = arith.constant 0 : i32
    return %c0_i32, %arg0 : i32, i32
  }
  func.func @transform_3(%arg0: i32, %arg1: i32) -> (i32, i32) {
    %c0_i32 = arith.constant 0 : i32
    return %arg1, %arg0 : i32, i32
  }
}

</mosaic_0001>

<llo_original>
// kernel: tpu_custom_call.1
$region0: #{tpu_custom_call.1}
  #allocation0 [shape = 'u32[]', space=smem, size = 0x4, offset = 0x4, fixed_abs, tag = 'smem constant byte address 0x4 - core index']
  #allocation1 [shape = 'u32[72,128]{1,0:T(1,128)}', space=vmem, size = 0x9000, scoped, tag = 'internal scratch']
  %s0 = inlined_call_operand.hbm [shape: f32[16,32], index: 0, kind: input, shape index: {}]
  %s1 = inlined_call_operand.hbm [shape: f32[32,128], index: 1, kind: input, shape index: {}]
  %s2 = inlined_call_operand.vmem [shape: f32[1,128], index: 2, kind: input, shape index: {}]
  %s3 = inlined_call_operand.hbm [shape: f32[16,128], index: 3, kind: output, shape index: {}]
  %s4 = sld [smem:[#allocation0]]
  $region30: #{tpu_custom_call.1} parent=0
    _
  %s6 = ssub.s32 1, %s4
  %s7 = scalar_select 0, %s6, %s4
  $region1: #{tpu_custom_call.1} parent=0
    #allocation2 [shape = 'u8[8192]{0}', space=vmem, size = 0x2000, scoped, tag = 'input window, operand 0, single buffered']
    #allocation3 [shape = 's32[1]{0}', space=sflag, size = 0x4, scoped, tag = 'scoped memory for tpu_custom_call.1']
    #allocation4 [shape = 's32[1]{0}', space=sflag, size = 0x4, scoped, tag = 'scoped memory for tpu_custom_call.1']
    #allocation5 [shape = 'u8[16384]{0}', space=vmem, size = 0x4000, scoped, tag = 'input window, operand 1, single buffered']
    #allocation6 [shape = 's32[1]{0}', space=sflag, size = 0x4, scoped, tag = 'scoped memory for tpu_custom_call.1']
    #allocation7 [shape = 'u8[8192]{0}', space=vmem, size = 0x2000, scoped, tag = 'output window, operand 0, single buffered']
    %8 = vsyncpa [#allocation3], 0
    %9 = vsyncpa [#allocation6], 0
    %10 = vsyncpa [#allocation4], 0
    // Predicated region
    $region2: #{tpu_custom_call.1} parent=1 // pred_check
      _
    $region3: #{tpu_custom_call.1} parent=1 // pred_check_branch
      %12 = sbr.rel (0) target = $region5
    $region4: #{tpu_custom_call.1} parent=1 // pred_region
      %14 = vsyncadd [#allocation3], 0
      %s15 = sshll.u32 %s0, 4
      %s16 = int_to_ptr.hbm [resolvable:$true] %s15
      %s17 = sshll.u32 [#allocation2], 4
      %s18 = int_to_ptr.vmem [resolvable:$true] %s17
      %23 = dma.hbm_to_vmem [thread:$0]  %s16, 256, %s18, [#allocation3], 128, 128, 8
    $region5: #{tpu_custom_call.1} parent=1 // pred_fallthru
      _
    // Predicated region
    $region6: #{tpu_custom_call.1} parent=1 // pred_check
      _
    $region7: #{tpu_custom_call.1} parent=1 // pred_check_branch
      %25 = sbr.rel (0) target = $region9
    $region8: #{tpu_custom_call.1} parent=1 // pred_region
      %27 = vsyncadd [#allocation6], 0
      %s28 = sshll.u32 %s1, 4
      %s29 = int_to_ptr.hbm [resolvable:$true] %s28
      %s30 = sshll.u32 [#allocation5], 4
      %s31 = int_to_ptr.vmem [resolvable:$true] %s30
      %36 = dma.hbm_to_vmem [thread:$0]  %s29, 512, %s31, [#allocation6], 128, 128, 8
    $region9: #{tpu_custom_call.1} parent=1 // pred_fallthru
      _
    // Predicated region
    $region10: #{tpu_custom_call.1} parent=1 // pred_check
      _
    $region11: #{tpu_custom_call.1} parent=1 // pred_check_branch
      %38 = sbr.rel (0) target = $region13
    $region12: #{tpu_custom_call.1} parent=1 // pred_region
      _
    $region13: #{tpu_custom_call.1} parent=1 // pred_fallthru
      _
    // Predicated region
    $region14: #{tpu_custom_call.1} parent=1 // pred_check
      _
    $region15: #{tpu_custom_call.1} parent=1 // pred_check_branch
      %40 = sbr.rel (0) target = $region17
    $region16: #{tpu_custom_call.1} parent=1 // pred_region
      %42 = dma.done [#allocation3], 256
    $region17: #{tpu_custom_call.1} parent=1 // pred_fallthru
      _
    // Predicated region
    $region18: #{tpu_custom_call.1} parent=1 // pred_check
      _
    $region19: #{tpu_custom_call.1} parent=1 // pred_check_branch
      %44 = sbr.rel (0) target = $region21
    $region20: #{tpu_custom_call.1} parent=1 // pred_region
      %46 = dma.done [#allocation6], 512
    $region21: #{tpu_custom_call.1} parent=1 // pred_fallthru
      _
    %v47 = vld [vmem:[%s2] sm:$0x1]
    %v48 = vld [vmem:[#allocation2] sm:$0xff]
    %v49 = vld [vmem:[#allocation2 + $0x8] sm:$0xff]
    %v50 = vld [vmem:[#allocation5] sm:$0xff]
    %v51 = vld [vmem:[#allocation5 + $0x8] sm:$0xff]
    %v52 = vld [vmem:[#allocation5 + $0x10] sm:$0xff]
    %v53 = vld [vmem:[#allocation5 + $0x18] sm:$0xff]
    %v55 = vperm.slane %v47, 0
    %vm57 = vcmask 261120
    %v59 = vsel %vm57, %v48, 0
    %v62 = vsel %vm57, %v49, 0
    %64 = vmatpush.msra.mxu0 0.0
    %65 = vmatpush.msra.mxu0 0.0
    %66 = vmatpush.msra.mxu0 0.0
    %67 = vmatpush.msra.mxu0 0.0
    %68 = vmatpush.msra.mxu0 0.0
    %69 = vmatpush.msra.mxu0 0.0
    %70 = vmatpush.msra.mxu0 0.0
    %71 = vmatpush.msra.mxu0 0.0
    %72 = vmatpush.msra.mxu0 0.0
    %73 = vmatpush.msra.mxu0 0.0
    %74 = vmatpush.msra.mxu0 0.0
    %75 = vmatpush.msra.mxu0 0.0
    %76 = vmatpush.msra.mxu0 %v53
    %77 = vmatpush.msra.mxu0 %v52
    %78 = vmatpush.msra.mxu0 %v51
    %79 = vmatpush.msra.mxu0 %v50
    %80 = vmatmul.f32.gmra.mxu0 %v59
    %v81 = vpop.f32.mrf.mxu0
    %v82 = vadd.f32 %v55, %v81
    %83 = vmatmul.f32.gmra.mxu0 %v62
    %v84 = vpop.f32.mrf.mxu0
    %v85 = vadd.f32 %v55, %v84
    %86 = vdwg.mxu0
    %v87 = vand.u32 2147483647, %v82
    %v88 = vand.u32 2147483647, %v85
    %v89 = vadd.f32 %v87, 1.0
    %v90 = vadd.f32 %v88, 1.0
    %v91 = vmul.f32 %v89, 30.0
    %v92 = vmul.f32 %v90, 30.0
    %v93 = vmul.f32 %v91, %v82
    %v94 = vmul.f32 %v92, %v85
    %v95 = vand.u32 2147483647, %v93
    %vm96 = vcmp.le.f32.partialorder %v95, 0.7853982
    %vm97 = vcmp.lt.s32.totalorder %v93, 0
    %v98 = vand.u32 %v93, 2139095040
    %v99 = vshrl.u32 %v98, 23
    %v100 = vsub.s32 %v99, 127
    %v101 = vand.u32 2147483647, %v93
    %v102 = vand.u32 %v101, 8388607
    %v103 = vor.u32 %v102, 8388608
    %v104 = vsub.s32 0, %v103
    %v105 = vadd.s32 %v100, 1
    %vm106 = vcmp.gt.s32.totalorder %v105, 0
    %v107 = vsel %vm106, %v105, 0
    %v108 = vshrl.u32 %v107, 5
    %v109 = vand.u32 %v107, 31
    %v110 = vsub.s32 32, %v109
    %v111 = vshrl.u32 683565275, %v110
    %v112 = vshll.u32 683565275, %v109
    %v113 = vshrl.u32 2475754826, %v110
    %v114 = vor.u32 %v112, %v113
    %v115 = vshll.u32 2475754826, %v109
    %v116 = vshrl.u32 2131351028, %v110
    %v117 = vor.u32 %v115, %v116
    %v118 = vshll.u32 2131351028, %v109
    %v119 = vshrl.u32 2102212464, %v110
    %v120 = vor.u32 %v118, %v119
    %v121 = vshll.u32 2102212464, %v109
    %v122 = vshrl.u32 920167782, %v110
    %v123 = vor.u32 %v121, %v122
    %v124 = vshll.u32 920167782, %v109
    %v125 = vshrl.u32 1326507024, %v110
    %v126 = vor.u32 %v124, %v125
    %vm127 = vcmp.lt.s32.totalorder %v108, 1
    %vm128 = vcmp.lt.s32.totalorder %v108, 2
    %vm129 = vcmp.lt.s32.totalorder %v108, 3
    %vm130 = vcmp.lt.s32.totalorder %v108, 4
    %v131 = vsel %vm127, %v111, %v114
    %v132 = vsel %vm130, %v120, 2102212464
    %v133 = vsel %vm129, %v117, %v132
    %v134 = vsel %vm128, %v131, %v133
    %v135 = vsel %vm127, %v114, %v117
    %v136 = vsel %vm130, %v123, 920167782
    %v137 = vsel %vm129, %v120, %v136
    %v138 = vsel %vm128, %v135, %v137
    %v139 = vsel %vm127, %v117, %v120
    %v140 = vsel %vm130, %v126, 1326507024
    %v141 = vsel %vm129, %v123, %v140
    %v142 = vsel %vm128, %v139, %v141
    %v143 = vshll.u32 %v103, 8
    %v144 = vand.u32 %v143, 65535
    %v145 = vshrl.u32 %v143, 16
    %v146 = vand.u32 %v142, 65535
    %v147 = vshrl.u32 %v142, 16
    %v148 = vmul.u32 %v144, %v146
    %v149 = vmul.u32 %v144, %v147
    %v150 = vmul.u32 %v145, %v146
    %v151 = vmul.u32 %v145, %v147
    %v152 = vshll.u32 %v149, 16
    %v153 = vshrl.u32 %v149, 16
    %v154 = vshll.u32 %v150, 16
    %v155 = vshrl.u32 %v150, 16
    %vm156 = vc.u32 %v148, %v152
    %v157 = vsel %vm156, 1, 0
    %v158 = vadd.s32 %v148, %v152
    %v159 = vadd.s32 %v151, %v157
    %vm160 = vc.u32 %v158, %v154
    %v161 = vsel %vm160, 1, 0
    %v162 = vadd.s32 %v158, %v154
    %v163 = vadd.s32 %v159, %v161
    %v164 = vadd.s32 %v163, %v153
    %v165 = vadd.s32 %v164, %v155
    %v166 = vand.u32 %v143, 65535
    %v167 = vshrl.u32 %v143, 16
    %v168 = vand.u32 %v138, 65535
    %v169 = vshrl.u32 %v138, 16
    %v170 = vmul.u32 %v166, %v168
    %v171 = vmul.u32 %v166, %v169
    %v172 = vmul.u32 %v167, %v168
    %v173 = vmul.u32 %v167, %v169
    %v174 = vshll.u32 %v171, 16
    %v175 = vshrl.u32 %v171, 16
    %v176 = vshll.u32 %v172, 16
    %v177 = vshrl.u32 %v172, 16
    %vm178 = vc.u32 %v170, %v174
    %v179 = vsel %vm178, 1, 0
    %v180 = vadd.s32 %v170, %v174
    %v181 = vadd.s32 %v173, %v179
    %vm182 = vc.u32 %v180, %v176
    %v183 = vsel %vm182, 1, 0
    %v184 = vadd.s32 %v180, %v176
    %v185 = vadd.s32 %v181, %v183
    %v186 = vadd.s32 %v185, %v175
    %v187 = vadd.s32 %v186, %v177
    %v188 = vmul.u32 %v143, %v134
    %v189 = vadd.s32 %v165, %v184
    %vm190 = vc.u32 %v165, %v184
    %v191 = vadd.s32 %v187, 1
    %v192 = vsel %vm190, %v191, %v187
    %v193 = vadd.s32 %v188, %v192
    %v194 = vadd.s32 %v193, 536870912
    %v195 = vshrl.u32 %v194, 30
    %v196 = vshll.u32 %v195, 30
    %v197 = vsub.s32 %v193, %v196
    %vm198 = vcmp.lt.s32.totalorder %v197, 0
    %v199 = vsub.s32 0, %v197
    %v200 = vsel %vm198, %v199, %v197
    %v201 = vclz %v200
    %v202 = vsub.s32 %v201, 2
    %vm203 = vcmp.gt.s32.totalorder 0, %v202
    %v204 = vsel %vm203, 0, %v202
    %v205 = vsub.s32 32, %v204
    %v206 = vshll.u32 %v197, %v204
    %v207 = vshrl.u32 %v189, %v205
    %v208 = vor.u32 %v206, %v207
    %v209 = vsub.s32 4294967266, %v204
    %v210 = vadd.s32 %v209, 127
    %v211 = vshll.u32 %v210, 23
    %v212 = vor.u32 4788187, %v211
    %v213 = vand.u32 2147483647, %v212
    %v215 = vcvt.s32.f32 %v208
    %v216 = vmul.f32 %v215, %v213
    %v217 = vxor.u32 %v216, 2147483648
    %v218 = vsel %vm97, %v217, %v216
    %v219 = vsub.s32 4, %v195
    %v220 = vsel %vm97, %v219, %v195
    %v221 = vsel %vm96, %v93, %v218
    %v222 = vsel %vm96, 0, %v220
    %v223 = vmul.f32 %v221, %v221
    %v224 = vmul.f32 %v223, -0.001358992
    %v225 = vadd.f32 %v224, 0.041655596
    %v226 = vmul.f32 %v223, %v225
    %v227 = vadd.f32 %v226, -0.4999988
    %v228 = vmul.f32 %v223, %v227
    %v229 = vadd.f32 1.0, %v228
    %v230 = vmul.f32 %v221, %v221
    %v231 = vmul.f32 %v230, -0.00019511016
    %v232 = vadd.f32 %v231, 0.008332121
    %v233 = vmul.f32 %v230, %v232
    %v234 = vadd.f32 %v233, -0.16666654
    %v235 = vmul.f32 %v230, %v234
    %v236 = vadd.f32 %v235, 1.0
    %v237 = vmul.f32 %v236, %v221
    %vm238 = vweird.f32 %v93
    %v239 = vadd.s32 %v222, 3
    %v240 = vand.u32 %v239, 3
    %vm241 = vcmp.lt.s32.totalorder %v240, 2
    %vm242 = vcmp.eq.s32.totalorder %v240, 0
    %v243 = vxor.u32 %v237, 2147483648
    %v244 = vsel %vm242, %v229, %v243
    %vm245 = vcmp.eq.s32.totalorder %v240, 2
    %v246 = vxor.u32 %v229, 2147483648
    %v247 = vsel %vm245, %v246, %v237
    %v248 = vsel %vm241, %v244, %v247
    %v249 = vsel %vm238, nan, %v248
    %v250 = vand.u32 2147483647, %v94
    %vm251 = vcmp.le.f32.partialorder %v250, 0.7853982
    %vm252 = vcmp.lt.s32.totalorder %v94, 0
    %v253 = vand.u32 %v94, 2139095040
    %v254 = vshrl.u32 %v253, 23
    %v255 = vsub.s32 %v254, 127
    %v256 = vand.u32 2147483647, %v94
    %v257 = vand.u32 %v256, 8388607
    %v258 = vor.u32 %v257, 8388608
    %v259 = vsub.s32 0, %v258
    %v260 = vadd.s32 %v255, 1
    %vm261 = vcmp.gt.s32.totalorder %v260, 0
    %v262 = vsel %vm261, %v260, 0
    %v263 = vshrl.u32 %v262, 5
    %v264 = vand.u32 %v262, 31
    %v265 = vsub.s32 32, %v264
    %v266 = vshrl.u32 683565275, %v265
    %v267 = vshll.u32 683565275, %v264
    %v268 = vshrl.u32 2475754826, %v265
    %v269 = vor.u32 %v267, %v268
    %v270 = vshll.u32 2475754826, %v264
    %v271 = vshrl.u32 2131351028, %v265
    %v272 = vor.u32 %v270, %v271
    %v273 = vshll.u32 2131351028, %v264
    %v274 = vshrl.u32 2102212464, %v265
    %v275 = vor.u32 %v273, %v274
    %v276 = vshll.u32 2102212464, %v264
    %v277 = vshrl.u32 920167782, %v265
    %v278 = vor.u32 %v276, %v277
    %v279 = vshll.u32 920167782, %v264
    %v280 = vshrl.u32 1326507024, %v265
    %v281 = vor.u32 %v279, %v280
    %vm282 = vcmp.lt.s32.totalorder %v263, 1
    %vm283 = vcmp.lt.s32.totalorder %v263, 2
    %vm284 = vcmp.lt.s32.totalorder %v263, 3
    %vm285 = vcmp.lt.s32.totalorder %v263, 4
    %v286 = vsel %vm282, %v266, %v269
    %v287 = vsel %vm285, %v275, 2102212464
    %v288 = vsel %vm284, %v272, %v287
    %v289 = vsel %vm283, %v286, %v288
    %v290 = vsel %vm282, %v269, %v272
    %v291 = vsel %vm285, %v278, 920167782
    %v292 = vsel %vm284, %v275, %v291
    %v293 = vsel %vm283, %v290, %v292
    %v294 = vsel %vm282, %v272, %v275
    %v295 = vsel %vm285, %v281, 1326507024
    %v296 = vsel %vm284, %v278, %v295
    %v297 = vsel %vm283, %v294, %v296
    %v298 = vshll.u32 %v258, 8
    %v299 = vand.u32 %v298, 65535
    %v300 = vshrl.u32 %v298, 16
    %v301 = vand.u32 %v297, 65535
    %v302 = vshrl.u32 %v297, 16
    %v303 = vmul.u32 %v299, %v301
    %v304 = vmul.u32 %v299, %v302
    %v305 = vmul.u32 %v300, %v301
    %v306 = vmul.u32 %v300, %v302
    %v307 = vshll.u32 %v304, 16
    %v308 = vshrl.u32 %v304, 16
    %v309 = vshll.u32 %v305, 16
    %v310 = vshrl.u32 %v305, 16
    %vm311 = vc.u32 %v303, %v307
    %v312 = vsel %vm311, 1, 0
    %v313 = vadd.s32 %v303, %v307
    %v314 = vadd.s32 %v306, %v312
    %vm315 = vc.u32 %v313, %v309
    %v316 = vsel %vm315, 1, 0
    %v317 = vadd.s32 %v313, %v309
    %v318 = vadd.s32 %v314, %v316
    %v319 = vadd.s32 %v318, %v308
    %v320 = vadd.s32 %v319, %v310
    %v321 = vand.u32 %v298, 65535
    %v322 = vshrl.u32 %v298, 16
    %v323 = vand.u32 %v293, 65535
    %v324 = vshrl.u32 %v293, 16
    %v325 = vmul.u32 %v321, %v323
    %v326 = vmul.u32 %v321, %v324
    %v327 = vmul.u32 %v322, %v323
    %v328 = vmul.u32 %v322, %v324
    %v329 = vshll.u32 %v326, 16
    %v330 = vshrl.u32 %v326, 16
    %v331 = vshll.u32 %v327, 16
    %v332 = vshrl.u32 %v327, 16
    %vm333 = vc.u32 %v325, %v329
    %v334 = vsel %vm333, 1, 0
    %v335 = vadd.s32 %v325, %v329
    %v336 = vadd.s32 %v328, %v334
    %vm337 = vc.u32 %v335, %v331
    %v338 = vsel %vm337, 1, 0
    %v339 = vadd.s32 %v335, %v331
    %v340 = vadd.s32 %v336, %v338
    %v341 = vadd.s32 %v340, %v330
    %v342 = vadd.s32 %v341, %v332
    %v343 = vmul.u32 %v298, %v289
    %v344 = vadd.s32 %v320, %v339
    %vm345 = vc.u32 %v320, %v339
    %v346 = vadd.s32 %v342, 1
    %v347 = vsel %vm345, %v346, %v342
    %v348 = vadd.s32 %v343, %v347
    %v349 = vadd.s32 %v348, 536870912
    %v350 = vshrl.u32 %v349, 30
    %v351 = vshll.u32 %v350, 30
    %v352 = vsub.s32 %v348, %v351
    %vm353 = vcmp.lt.s32.totalorder %v352, 0
    %v354 = vsub.s32 0, %v352
    %v355 = vsel %vm353, %v354, %v352
    %v356 = vclz %v355
    %v357 = vsub.s32 %v356, 2
    %vm358 = vcmp.gt.s32.totalorder 0, %v357
    %v359 = vsel %vm358, 0, %v357
    %v360 = vsub.s32 32, %v359
    %v361 = vshll.u32 %v352, %v359
    %v362 = vshrl.u32 %v344, %v360
    %v363 = vor.u32 %v361, %v362
    %v364 = vsub.s32 4294967266, %v359
    %v365 = vadd.s32 %v364, 127
    %v366 = vshll.u32 %v365, 23
    %v367 = vor.u32 4788187, %v366
    %v368 = vand.u32 2147483647, %v367
    %v370 = vcvt.s32.f32 %v363
    %v371 = vmul.f32 %v370, %v368
    %v372 = vxor.u32 %v371, 2147483648
    %v373 = vsel %vm252, %v372, %v371
    %v374 = vsub.s32 4, %v350
    %v375 = vsel %vm252, %v374, %v350
    %v376 = vsel %vm251, %v94, %v373
    %v377 = vsel %vm251, 0, %v375
    %v378 = vmul.f32 %v376, %v376
    %v379 = vmul.f32 %v378, -0.001358992
    %v380 = vadd.f32 %v379, 0.041655596
    %v381 = vmul.f32 %v378, %v380
    %v382 = vadd.f32 %v381, -0.4999988
    %v383 = vmul.f32 %v378, %v382
    %v384 = vadd.f32 1.0, %v383
    %v385 = vmul.f32 %v376, %v376
    %v386 = vmul.f32 %v385, -0.00019511016
    %v387 = vadd.f32 %v386, 0.008332121
    %v388 = vmul.f32 %v385, %v387
    %v389 = vadd.f32 %v388, -0.16666654
    %v390 = vmul.f32 %v385, %v389
    %v391 = vadd.f32 %v390, 1.0
    %v392 = vmul.f32 %v391, %v376
    %vm393 = vweird.f32 %v94
    %v394 = vadd.s32 %v377, 3
    %v395 = vand.u32 %v394, 3
    %vm396 = vcmp.lt.s32.totalorder %v395, 2
    %vm397 = vcmp.eq.s32.totalorder %v395, 0
    %v398 = vxor.u32 %v392, 2147483648
    %v399 = vsel %vm397, %v384, %v398
    %vm400 = vcmp.eq.s32.totalorder %v395, 2
    %v401 = vxor.u32 %v384, 2147483648
    %v402 = vsel %vm400, %v401, %v392
    %v403 = vsel %vm396, %v399, %v402
    %v404 = vsel %vm393, nan, %v403
    %405 = vst [vmem:[#allocation7] sm:$0xff] %v249
    %406 = vst [vmem:[#allocation7 + $0x8] sm:$0xff] %v404
    // Predicated region
    $region22: #{tpu_custom_call.1} parent=1 // pred_check
      _
    $region23: #{tpu_custom_call.1} parent=1 // pred_check_branch
      %408 = sbr.rel (0) target = $region25
    $region24: #{tpu_custom_call.1} parent=1 // pred_region
      %410 = vsyncadd [#allocation4], 0
      %s411 = sshll.u32 [#allocation7], 4
      %s412 = int_to_ptr.vmem [resolvable:$true] %s411
      %s413 = sshll.u32 %s3, 4
      %s414 = int_to_ptr.hbm [resolvable:$true] %s413
      %419 = dma.vmem_to_hbm [thread:$0]  %s412, 256, %s414, [#allocation4], 128, 128, 8
    $region25: #{tpu_custom_call.1} parent=1 // pred_fallthru
      _
    // Predicated region
    $region26: #{tpu_custom_call.1} parent=1 // pred_check
      _
    $region27: #{tpu_custom_call.1} parent=1 // pred_check_branch
      %421 = sbr.rel (0) target = $region29
    $region28: #{tpu_custom_call.1} parent=1 // pred_region
      %423 = dma.done [#allocation4], 256
    $region29: #{tpu_custom_call.1} parent=1 // pred_fallthru
      _
    %424 = vsyncpa [#allocation3], 1
    %425 = vsyncpa [#allocation6], 1
    %426 = vsyncpa [#allocation4], 1

</llo_original>
